<compile_context>
chip_gen: v7x
topology: tpu7x:2x2x1
jax: 0.10.0
libtpu: 0.0.40
codegen_flags: <defaults>
</compile_context>

<pallas_src>
import math

import jax
import jax.numpy as jnp
from jax import lax
from jax.experimental import pallas as pl
from jax.experimental.pallas import tpu as pltpu


def _round_up(a, b):
    return (a + b - 1) // b * b


def _ffn_geglu_kernel(x_ref, w1h_ref, w1g_ref, b1h_ref, b1g_ref, w2_ref, b2_ref,
                      o_ref, acc_ref):
    # x_ref:   (tm, dim)           native dtype
    # w1h_ref: (dim, tk)           hidden-half columns of W1 for this K chunk
    # w1g_ref: (dim, tk)           gate-half columns of W1 for this K chunk
    # b1h_ref: (1, tk), b1g_ref: (1, tk)
    # w2_ref:  (tk, dim_out_pad), b2_ref: (1, dim_out_pad)
    # o_ref:   (tm, dim_out_pad);  acc_ref: (tm, dim_out_pad) f32 scratch
    k = pl.program_id(1)

    @pl.when(k == 0)
    def _():
        acc_ref[...] = jnp.zeros_like(acc_ref)

    x = x_ref[...]  # keep native dtype -> MXU handles bf16/f32 with f32 accumulation
    hid = jnp.dot(x, w1h_ref[...], preferred_element_type=jnp.float32)
    gate = jnp.dot(x, w1g_ref[...], preferred_element_type=jnp.float32)
    hid = hid + b1h_ref[...].astype(jnp.float32)
    gate = gate + b1g_ref[...].astype(jnp.float32)

    # Exact (erf) GELU on the gate, in f32 (matches torch.nn.functional.gelu default).
    g = 0.5 * gate * (1.0 + lax.erf(gate * (1.0 / math.sqrt(2.0))))
    h = (hid * g).astype(w2_ref.dtype)  # cast back to native dtype for 2nd MXU pass

    acc_ref[...] += jnp.dot(h, w2_ref[...], preferred_element_type=jnp.float32)

    @pl.when(k == pl.num_programs(1) - 1)
    def _():
        o_ref[...] = (acc_ref[...] + b2_ref[...].astype(jnp.float32)).astype(o_ref.dtype)


def feed_forward_geglu(x, w1, b1, w2, b2, *, tm_target=256):
    """x: (batch, seq, dim) -> (batch, seq, dim_out).

    w1: (dim, 2*inner), b1: (2*inner,), w2: (inner, dim_out), b2: (dim_out,)
    """
    batch, seq, dim = x.shape
    two_inner = w1.shape[1]
    inner = two_inner // 2
    dim_out = w2.shape[1]

    M = batch * seq
    x2d = x.reshape(M, dim)

    # ---- tile sizes ----------------------------------------------------------
    tm = min(tm_target, _round_up(M, 8))          # big token tile, clamped for tiny M
    M_pad = _round_up(M, tm)

    inner_pad = _round_up(inner, 128)             # contraction tiled over inner
    tk = 512
    while tk > 128 and inner_pad % tk != 0:
        tk //= 2
    tk = min(tk, inner_pad)

    dim_out_pad = _round_up(dim_out, 128)         # lane-dense output stores

    # ---- pre-split W1 into hidden/gate halves, zero-pad (padding is exact) ----
    w1h = w1[:, :inner]
    w1g = w1[:, inner:]
    b1h = b1[:inner].reshape(1, inner)
    b1g = b1[inner:].reshape(1, inner)
    w2p = w2
    b2p = b2.reshape(1, dim_out)

    if M_pad != M:
        x2d = jnp.pad(x2d, ((0, M_pad - M), (0, 0)))
    if inner_pad != inner:
        pad_i = inner_pad - inner
        w1h = jnp.pad(w1h, ((0, 0), (0, pad_i)))
        w1g = jnp.pad(w1g, ((0, 0), (0, pad_i)))
        b1h = jnp.pad(b1h, ((0, 0), (0, pad_i)))
        b1g = jnp.pad(b1g, ((0, 0), (0, pad_i)))
        w2p = jnp.pad(w2p, ((0, pad_i), (0, 0)))
    if dim_out_pad != dim_out:
        pad_o = dim_out_pad - dim_out
        w2p = jnp.pad(w2p, ((0, 0), (0, pad_o)))
        b2p = jnp.pad(b2p, ((0, 0), (0, pad_o)))

    grid = (M_pad // tm, inner_pad // tk)

    itemsize = jnp.dtype(x.dtype).itemsize
    flops = 2 * M * dim * (2 * inner) + 2 * M * inner * dim_out
    bytes_accessed = (
        M * dim * itemsize
        + w1.size * jnp.dtype(w1.dtype).itemsize
        + b1.size * jnp.dtype(b1.dtype).itemsize
        + w2.size * jnp.dtype(w2.dtype).itemsize
        + b2.size * jnp.dtype(b2.dtype).itemsize
        + M * dim_out * itemsize
    )

    out2d = pl.pallas_call(
        _ffn_geglu_kernel,
        out_shape=jax.ShapeDtypeStruct((M_pad, dim_out_pad), x.dtype),
        grid_spec=pltpu.PrefetchScalarGridSpec(
            num_scalar_prefetch=0,
            grid=grid,
            in_specs=[
                pl.BlockSpec((tm, dim), lambda i, k: (i, 0)),          # x tokens
                pl.BlockSpec((dim, tk), lambda i, k: (0, k)),          # W1 hidden cols
                pl.BlockSpec((dim, tk), lambda i, k: (0, k)),          # W1 gate cols
                pl.BlockSpec((1, tk), lambda i, k: (0, k)),            # b1 hidden
                pl.BlockSpec((1, tk), lambda i, k: (0, k)),            # b1 gate
                pl.BlockSpec((tk, dim_out_pad), lambda i, k: (k, 0)),  # W2 row chunk
                pl.BlockSpec((1, dim_out_pad), lambda i, k: (0, 0)),   # b2
            ],
            out_specs=pl.BlockSpec((tm, dim_out_pad), lambda i, k: (i, 0)),
            scratch_shapes=[pltpu.VMEM((tm, dim_out_pad), jnp.float32)],
        ),
        compiler_params=pltpu.CompilerParams(
            dimension_semantics=("parallel", "arbitrary"),
            vmem_limit_bytes=48 * 1024 * 1024,
        ),
        cost_estimate=pl.CostEstimate(
            flops=flops,
            transcendentals=M * inner,
            bytes_accessed=bytes_accessed,
        ),
    )(x2d, w1h, w1g, b1h, b1g, w2p, b2p)

    out2d = out2d[:M, :dim_out]
    return out2d.reshape(batch, seq, dim_out)


def _reference(x, w1, b1, w2, b2):
    proj = jnp.einsum("bsd,df->bsf", x.astype(jnp.float32), w1.astype(jnp.float32)) + b1
    inner = proj.shape[-1] // 2
    hidden, gate = proj[..., :inner], proj[..., inner:]
    g = 0.5 * gate * (1.0 + lax.erf(gate / jnp.sqrt(2.0)))
    h = hidden * g
    out = jnp.einsum("bsf,fo->bso", h, w2.astype(jnp.float32)) + b2
    return out.astype(x.dtype)


if __name__ == "__main__":
    # Module config: dim=32, mult=4 -> inner_dim=128, dim_out=dim=32, geglu, dropout=0.
    batch, seq, dim = 2, 8, 32
    mult = 4
    inner_dim = dim * mult          # 128
    dim_out = dim                   # 32

    key = jax.random.PRNGKey(0)
    k_x, k_w1, k_b1, k_w2, k_b2, k_x2 = jax.random.split(key, 6)

    x = jax.random.normal(k_x, (batch, seq, dim), dtype=jnp.float32)
    # GEGLU.proj: Linear(dim, 2*inner_dim)
    w1 = jax.random.normal(k_w1, (dim, 2 * inner_dim), dtype=jnp.float32) * 0.02
    b1 = jax.random.normal(k_b1, (2 * inner_dim,), dtype=jnp.float32) * 0.02
    # net[2]: Linear(inner_dim, dim_out)
    w2 = jax.random.normal(k_w2, (inner_dim, dim_out), dtype=jnp.float32) * 0.02
    b2 = jax.random.normal(k_b2, (dim_out,), dtype=jnp.float32) * 0.02

    out = feed_forward_geglu(x, w1, b1, w2, b2)
    out = jax.block_until_ready(out)

    ref = _reference(x, w1, b1, w2, b2)
    assert out.shape == (batch, seq, dim_out)
    assert jnp.allclose(out, ref, atol=1e-4, rtol=1e-4), "mismatch vs reference"

    # Second check: token count not divisible by the tile (exercises M padding path).
    x_odd = jax.random.normal(k_x2, (batch, seq + 1, dim), dtype=jnp.float32)
    out_odd = jax.block_until_ready(feed_forward_geglu(x_odd, w1, b1, w2, b2))
    ref_odd = _reference(x_odd, w1, b1, w2, b2)
    assert out_odd.shape == (batch, seq + 1, dim_out)
    assert jnp.allclose(out_odd, ref_odd, atol=1e-4, rtol=1e-4), "mismatch (padded M)"

    print("KERNEL_OK")
</pallas_src>

<mosaic_0001>
module attributes {stable_mosaic.version = 11 : i64} {
  func.func @_ffn_geglu_kernel(%arg0: i32, %arg1: i32, %arg2: memref<16x32xf32, #tpu.memory_space<vmem>>, %arg3: memref<32x128xf32, #tpu.memory_space<vmem>>, %arg4: memref<32x128xf32, #tpu.memory_space<vmem>>, %arg5: memref<1x128xf32, #tpu.memory_space<vmem>>, %arg6: memref<1x128xf32, #tpu.memory_space<vmem>>, %arg7: memref<128x128xf32, #tpu.memory_space<vmem>>, %arg8: memref<1x128xf32, #tpu.memory_space<vmem>>, %arg9: memref<16x128xf32, #tpu.memory_space<vmem>>, %arg10: memref<16x128xf32, #tpu.memory_space<vmem>>) attributes {dimension_semantics = [#tpu.dimension_semantics<parallel>, #tpu.dimension_semantics<arbitrary>], iteration_bounds = array<i64: 1, 1>, scalar_prefetch = 0 : i64, scratch_operands = 1 : i64, tpu.core_type = #tpu.core_type<tc>, window_params = [{transform_indices = @transform_0, window_bounds = array<i64: 16, 32>}, {transform_indices = @transform_1, window_bounds = array<i64: 32, 128>}, {transform_indices = @transform_2, window_bounds = array<i64: 32, 128>}, {transform_indices = @transform_3, window_bounds = array<i64: 1, 128>}, {transform_indices = @transform_4, window_bounds = array<i64: 1, 128>}, {transform_indices = @transform_5, window_bounds = array<i64: 128, 128>}, {pipeline_mode = #tpu.pipeline_mode<synchronous>, transform_indices = @transform_6, window_bounds = array<i64: 1, 128>}, {transform_indices = @transform_7, window_bounds = array<i64: 16, 128>}]} {
    %c0_i32 = arith.constant 0 : i32
    %0 = arith.cmpi eq, %arg1, %c0_i32 : i32
    %1 = arith.extui %0 : i1 to i32
    %c0_i32_0 = arith.constant 0 : i32
    %2 = arith.cmpi ne, %1, %c0_i32_0 : i32
    scf.if %2 {
      %cst_23 = arith.constant 0.000000e+00 : f32
      %31 = vector.broadcast %cst_23 : f32 to vector<16x128xf32>
      %c0_24 = arith.constant 0 : index
      %c0_25 = arith.constant 0 : index
      %32 = vector.load %arg10[%c0_24, %c0_25] : memref<16x128xf32, #tpu.memory_space<vmem>>, vector<16x128xf32>
      tpu.vector_store %arg10[%c0_24, %c0_25], %31 {strides = array<i32>} : memref<16x128xf32, #tpu.memory_space<vmem>>, vector<16x128xf32>,
    } else {
    }
    %c0 = arith.constant 0 : index
    %c0_1 = arith.constant 0 : index
    %3 = vector.load %arg2[%c0, %c0_1] : memref<16x32xf32, #tpu.memory_space<vmem>>, vector<16x32xf32>
    %c0_2 = arith.constant 0 : index
    %c0_3 = arith.constant 0 : index
    %4 = vector.load %arg3[%c0_2, %c0_3] : memref<32x128xf32, #tpu.memory_space<vmem>>, vector<32x128xf32>
    %cst = arith.constant dense<0.000000e+00> : vector<16x128xf32>
    %5 = tpu.matmul %3, %4, %cst {dimension_numbers = #tpu.dot_dimension_numbers<[1], [0], [0], [1], [0, 0, 1, 1], [], []>} : vector<16x32xf32>, vector<32x128xf32>, vector<16x128xf32> -> vector<16x128xf32>
    %c0_4 = arith.constant 0 : index
    %c0_5 = arith.constant 0 : index
    %6 = vector.load %arg4[%c0_4, %c0_5] : memref<32x128xf32, #tpu.memory_space<vmem>>, vector<32x128xf32>
    %cst_6 = arith.constant dense<0.000000e+00> : vector<16x128xf32>
    %7 = tpu.matmul %3, %6, %cst_6 {dimension_numbers = #tpu.dot_dimension_numbers<[1], [0], [0], [1], [0, 0, 1, 1], [], []>} : vector<16x32xf32>, vector<32x128xf32>, vector<16x128xf32> -> vector<16x128xf32>
    %c0_7 = arith.constant 0 : index
    %c0_8 = arith.constant 0 : index
    %8 = vector.load %arg5[%c0_7, %c0_8] : memref<1x128xf32, #tpu.memory_space<vmem>>, vector<1x128xf32>
    %9 = vector.broadcast %8 : vector<1x128xf32> to vector<16x128xf32>
    %10 = arith.addf %5, %9 : vector<16x128xf32>
    %c0_9 = arith.constant 0 : index
    %c0_10 = arith.constant 0 : index
    %11 = vector.load %arg6[%c0_9, %c0_10] : memref<1x128xf32, #tpu.memory_space<vmem>>, vector<1x128xf32>
    %12 = vector.broadcast %11 : vector<1x128xf32> to vector<16x128xf32>
    %13 = arith.addf %7, %12 : vector<16x128xf32>
    %cst_11 = arith.constant 5.000000e-01 : f32
    %14 = vector.broadcast %cst_11 : f32 to vector<16x128xf32>
    %15 = arith.mulf %14, %13 : vector<16x128xf32>
    %cst_12 = arith.constant 0.707106769 : f32
    %16 = vector.broadcast %cst_12 : f32 to vector<16x128xf32>
    %17 = arith.mulf %13, %16 : vector<16x128xf32>
    %18 = math.erf %17 : vector<16x128xf32>
    %cst_13 = arith.constant 1.000000e+00 : f32
    %19 = vector.broadcast %cst_13 : f32 to vector<16x128xf32>
    %20 = arith.addf %19, %18 : vector<16x128xf32>
    %21 = arith.mulf %15, %20 : vector<16x128xf32>
    %22 = arith.mulf %10, %21 : vector<16x128xf32>
    %c0_14 = arith.constant 0 : index
    %c0_15 = arith.constant 0 : index
    %23 = vector.load %arg10[%c0_14, %c0_15] : memref<16x128xf32, #tpu.memory_space<vmem>>, vector<16x128xf32>
    %c0_16 = arith.constant 0 : index
    %c0_17 = arith.constant 0 : index
    %24 = vector.load %arg7[%c0_16, %c0_17] : memref<128x128xf32, #tpu.memory_space<vmem>>, vector<128x128xf32>
    %cst_18 = arith.constant dense<0.000000e+00> : vector<16x128xf32>
    %25 = tpu.matmul %22, %24, %cst_18 {dimension_numbers = #tpu.dot_dimension_numbers<[1], [0], [0], [1], [0, 0, 1, 1], [], []>} : vector<16x128xf32>, vector<128x128xf32>, vector<16x128xf32> -> vector<16x128xf32>
    %26 = arith.addf %23, %25 : vector<16x128xf32>
    %c0_19 = arith.constant 0 : index
    %c0_20 = arith.constant 0 : index
    %27 = vector.load %arg10[%c0_19, %c0_20] : memref<16x128xf32, #tpu.memory_space<vmem>>, vector<16x128xf32>
    tpu.vector_store %arg10[%c0_19, %c0_20], %26 {strides = array<i32>} : memref<16x128xf32, #tpu.memory_space<vmem>>, vector<16x128xf32>,
    %c0_i32_21 = arith.constant 0 : i32
    %28 = arith.cmpi eq, %arg1, %c0_i32_21 : i32
    %29 = arith.extui %28 : i1 to i32
    %c0_i32_22 = arith.constant 0 : i32
    %30 = arith.cmpi ne, %29, %c0_i32_22 : i32
    scf.if %30 {
      %c0_23 = arith.constant 0 : index
      %c0_24 = arith.constant 0 : index
      %31 = vector.load %arg10[%c0_23, %c0_24] : memref<16x128xf32, #tpu.memory_space<vmem>>, vector<16x128xf32>
      %c0_25 = arith.constant 0 : index
      %c0_26 = arith.constant 0 : index
      %32 = vector.load %arg8[%c0_25, %c0_26] : memref<1x128xf32, #tpu.memory_space<vmem>>, vector<1x128xf32>
      %33 = vector.broadcast %32 : vector<1x128xf32> to vector<16x128xf32>
      %34 = arith.addf %31, %33 : vector<16x128xf32>
      %c0_27 = arith.constant 0 : index
      %c0_28 = arith.constant 0 : index
      %35 = vector.load %arg9[%c0_27, %c0_28] : memref<16x128xf32, #tpu.memory_space<vmem>>, vector<16x128xf32>
      tpu.vector_store %arg9[%c0_27, %c0_28], %34 {strides = array<i32>} : memref<16x128xf32, #tpu.memory_space<vmem>>, vector<16x128xf32>,
    } else {
    }
    return
  }
  func.func @transform_0(%arg0: i32, %arg1: i32) -> (i32, i32) {
    %c0_i32 = arith.constant 0 : i32
    %c0_i32_0 = arith.constant 0 : i32
    return %arg0, %c0_i32 : i32, i32
  }
  func.func @transform_1(%arg0: i32, %arg1: i32) -> (i32, i32) {
    %c0_i32 = arith.constant 0 : i32
    %c0_i32_0 = arith.constant 0 : i32
    return %c0_i32, %arg1 : i32, i32
  }
  func.func @transform_2(%arg0: i32, %arg1: i32) -> (i32, i32) {
    %c0_i32 = arith.constant 0 : i32
    %c0_i32_0 = arith.constant 0 : i32
    return %c0_i32, %arg1 : i32, i32
  }
  func.func @transform_3(%arg0: i32, %arg1: i32) -> (i32, i32) {
    %c0_i32 = arith.constant 0 : i32
    %c0_i32_0 = arith.constant 0 : i32
    return %c0_i32, %arg1 : i32, i32
  }
  func.func @transform_4(%arg0: i32, %arg1: i32) -> (i32, i32) {
    %c0_i32 = arith.constant 0 : i32
    %c0_i32_0 = arith.constant 0 : i32
    return %c0_i32, %arg1 : i32, i32
  }
  func.func @transform_5(%arg0: i32, %arg1: i32) -> (i32, i32) {
    %c0_i32 = arith.constant 0 : i32
    %c0_i32_0 = arith.constant 0 : i32
    return %arg1, %c0_i32 : i32, i32
  }
  func.func @transform_6(%arg0: i32, %arg1: i32) -> (i32, i32) {
    %c0_i32 = arith.constant 0 : i32
    %c0_i32_0 = arith.constant 0 : i32
    %c0_i32_1 = arith.constant 0 : i32
    return %c0_i32, %c0_i32_0 : i32, i32
  }
  func.func @transform_7(%arg0: i32, %arg1: i32) -> (i32, i32) {
    %c0_i32 = arith.constant 0 : i32
    %c0_i32_0 = arith.constant 0 : i32
    return %arg0, %c0_i32 : i32, i32
  }
}

</mosaic_0001>

<llo_original>
// kernel: tpu_custom_call.1
$region0: #{tpu_custom_call.1}
  #allocation0 [shape = 'u32[]', space=smem, size = 0x4, offset = 0x4, fixed_abs, tag = 'smem constant byte address 0x4 - core index']
  #allocation1 [shape = 'u32[144,128]{1,0:T(1,128)}', space=vmem, size = 0x12000, scoped, tag = 'internal scratch']
  #allocation2 [shape = 'f32[16,128]{1,0:T(8,128)}', space=vmem, size = 0x2000, scoped, tag = 'scratch operand']
  %s0 = inlined_call_operand.hbm [shape: f32[16,32], index: 0, kind: input, shape index: {}]
  %s1 = inlined_call_operand.hbm [shape: f32[32,128], index: 1, kind: input, shape index: {}]
  %s2 = inlined_call_operand.hbm [shape: f32[32,128], index: 2, kind: input, shape index: {}]
  %s3 = inlined_call_operand.vmem [shape: f32[1,128], index: 3, kind: input, shape index: {}]
  %s4 = inlined_call_operand.vmem [shape: f32[1,128], index: 4, kind: input, shape index: {}]
  %s5 = inlined_call_operand.hbm [shape: f32[128,128], index: 5, kind: input, shape index: {}]
  %s6 = inlined_call_operand.vmem [shape: f32[1,128], index: 6, kind: input, shape index: {}]
  %s7 = inlined_call_operand.hbm [shape: f32[16,128], index: 7, kind: output, shape index: {}]
  %s8 = sld [smem:[#allocation0]]
  $region62: #{tpu_custom_call.1} parent=0
    _
  %s10 = ssub.s32 1, %s8
  %s11 = scalar_select 0, %s10, %s8
  $region1: #{tpu_custom_call.1} parent=0
    #allocation3 [shape = 'u8[8192]{0}', space=vmem, size = 0x2000, scoped, tag = 'input window, operand 0, single buffered']
    #allocation4 [shape = 's32[1]{0}', space=sflag, size = 0x4, scoped, tag = 'scoped memory for tpu_custom_call.1']
    #allocation5 [shape = 's32[1]{0}', space=sflag, size = 0x4, scoped, tag = 'scoped memory for tpu_custom_call.1']
    #allocation6 [shape = 'u8[16384]{0}', space=vmem, size = 0x4000, scoped, tag = 'input window, operand 1, single buffered']
    #allocation7 [shape = 's32[1]{0}', space=sflag, size = 0x4, scoped, tag = 'scoped memory for tpu_custom_call.1']
    #allocation8 [shape = 'u8[16384]{0}', space=vmem, size = 0x4000, scoped, tag = 'input window, operand 2, single buffered']
    #allocation9 [shape = 'u8[65536]{0}', space=vmem, size = 0x10000, scoped, tag = 'input window, operand 5, single buffered']
    #allocation10 [shape = 's32[1]{0}', space=sflag, size = 0x4, scoped, tag = 'scoped memory for tpu_custom_call.1']
    #allocation11 [shape = 'u8[8192]{0}', space=vmem, size = 0x2000, scoped, tag = 'output window, operand 0, single buffered']
    %12 = vsyncpa [#allocation4], 0
    %13 = vsyncpa [#allocation7], 0
    %14 = vsyncpa [#allocation10], 0
    %15 = vsyncpa [#allocation5], 0
    // Predicated region
    $region2: #{tpu_custom_call.1} parent=1 // pred_check
      _
    $region3: #{tpu_custom_call.1} parent=1 // pred_check_branch
      %17 = sbr.rel (0) target = $region5
    $region4: #{tpu_custom_call.1} parent=1 // pred_region
      %s19 = ssub.s32 256, 256
      %20 = vsyncadd [#allocation4], %s19
      %s21 = sshll.u32 [#allocation3], 4
      %s22 = int_to_ptr.vmem [resolvable:$true] %s21
      %27 = dma.hbm_to_vmem [thread:$0]  %s0, 256, %s22, [#allocation4], 128, 128, 8
    $region5: #{tpu_custom_call.1} parent=1 // pred_fallthru
      _
    // Predicated region
    $region6: #{tpu_custom_call.1} parent=1 // pred_check
      _
    $region7: #{tpu_custom_call.1} parent=1 // pred_check_branch
      %29 = sbr.rel (0) target = $region9
    $region8: #{tpu_custom_call.1} parent=1 // pred_region
      %s31 = ssub.s32 512, 512
      %32 = vsyncadd [#allocation7], %s31
      %s33 = sshll.u32 [#allocation6], 4
      %s34 = int_to_ptr.vmem [resolvable:$true] %s33
      %39 = dma.hbm_to_vmem [thread:$0]  %s1, 512, %s34, [#allocation7], 128, 128, 8
    $region9: #{tpu_custom_call.1} parent=1 // pred_fallthru
      _
    // Predicated region
    $region10: #{tpu_custom_call.1} parent=1 // pred_check
      _
    $region11: #{tpu_custom_call.1} parent=1 // pred_check_branch
      %41 = sbr.rel (0) target = $region13
    $region12: #{tpu_custom_call.1} parent=1 // pred_region
      %s43 = ssub.s32 512, 512
      %44 = vsyncadd [#allocation7], %s43
      %s45 = sshll.u32 [#allocation8], 4
      %s46 = int_to_ptr.vmem [resolvable:$true] %s45
      %51 = dma.hbm_to_vmem [thread:$0]  %s2, 512, %s46, [#allocation7], 128, 128, 8
    $region13: #{tpu_custom_call.1} parent=1 // pred_fallthru
      _
    // Predicated region
    $region14: #{tpu_custom_call.1} parent=1 // pred_check
      _
    $region15: #{tpu_custom_call.1} parent=1 // pred_check_branch
      %53 = sbr.rel (0) target = $region17
    $region16: #{tpu_custom_call.1} parent=1 // pred_region
      _
    $region17: #{tpu_custom_call.1} parent=1 // pred_fallthru
      _
    // Predicated region
    $region18: #{tpu_custom_call.1} parent=1 // pred_check
      _
    $region19: #{tpu_custom_call.1} parent=1 // pred_check_branch
      %55 = sbr.rel (0) target = $region21
    $region20: #{tpu_custom_call.1} parent=1 // pred_region
      _
    $region21: #{tpu_custom_call.1} parent=1 // pred_fallthru
      _
    // Predicated region
    $region22: #{tpu_custom_call.1} parent=1 // pred_check
      _
    $region23: #{tpu_custom_call.1} parent=1 // pred_check_branch
      %57 = sbr.rel (0) target = $region25
    $region24: #{tpu_custom_call.1} parent=1 // pred_region
      %s59 = ssub.s32 2048, 2048
      %60 = vsyncadd [#allocation10], %s59
      %s61 = sshll.u32 [#allocation9], 4
      %s62 = int_to_ptr.vmem [resolvable:$true] %s61
      %67 = dma.hbm_to_vmem [thread:$0]  %s5, 2048, %s62, [#allocation10], 128, 128, 8
    $region25: #{tpu_custom_call.1} parent=1 // pred_fallthru
      _
    // Predicated region
    $region26: #{tpu_custom_call.1} parent=1 // pred_check
      _
    $region27: #{tpu_custom_call.1} parent=1 // pred_check_branch
      %69 = sbr.rel (0) target = $region29
    $region28: #{tpu_custom_call.1} parent=1 // pred_region
      _
    $region29: #{tpu_custom_call.1} parent=1 // pred_fallthru
      _
    // Predicated region
    $region30: #{tpu_custom_call.1} parent=1 // pred_check
      _
    $region31: #{tpu_custom_call.1} parent=1 // pred_check_branch
      %71 = sbr.rel (0) target = $region33
    $region32: #{tpu_custom_call.1} parent=1 // pred_region
      %72 = dma.done [#allocation4], 256
    $region33: #{tpu_custom_call.1} parent=1 // pred_fallthru
      _
    // Predicated region
    $region34: #{tpu_custom_call.1} parent=1 // pred_check
      _
    $region35: #{tpu_custom_call.1} parent=1 // pred_check_branch
      %74 = sbr.rel (0) target = $region37
    $region36: #{tpu_custom_call.1} parent=1 // pred_region
      %75 = dma.done [#allocation7], 512
    $region37: #{tpu_custom_call.1} parent=1 // pred_fallthru
      _
    // Predicated region
    $region38: #{tpu_custom_call.1} parent=1 // pred_check
      _
    $region39: #{tpu_custom_call.1} parent=1 // pred_check_branch
      %77 = sbr.rel (0) target = $region41
    $region40: #{tpu_custom_call.1} parent=1 // pred_region
      %78 = dma.done [#allocation7], 512
    $region41: #{tpu_custom_call.1} parent=1 // pred_fallthru
      _
    // Predicated region
    $region42: #{tpu_custom_call.1} parent=1 // pred_check
      _
    $region43: #{tpu_custom_call.1} parent=1 // pred_check_branch
      %80 = sbr.rel (0) target = $region45
    $region44: #{tpu_custom_call.1} parent=1 // pred_region
      %81 = dma.done [#allocation10], 2048
    $region45: #{tpu_custom_call.1} parent=1 // pred_fallthru
      _
    %p82 = scmp.eq.s32.totalorder 0, 0
    // Predicated region
    $region46: #{tpu_custom_call.1} parent=1 // pred_check
      %p83 = pneg %p82
    $region47: #{tpu_custom_call.1} parent=1 // pred_check_branch
      %85 = sbr.rel (%p83) target = $region49
    $region48: #{tpu_custom_call.1} parent=1 // pred_region
      %86 = vst [vmem:[#allocation2] sm:$0xff] 0.0
      %87 = vst [vmem:[#allocation2 + $0x8] sm:$0xff] 0.0
    $region49: #{tpu_custom_call.1} parent=1 // pred_fallthru
      _
    %v88 = vld [vmem:[#allocation3] sm:$0xff]
    %v89 = vld [vmem:[#allocation3 + $0x8] sm:$0xff]
    %v90 = vld [vmem:[#allocation6] sm:$0xff]
    %v91 = vld [vmem:[#allocation6 + $0x8] sm:$0xff]
    %v92 = vld [vmem:[#allocation6 + $0x10] sm:$0xff]
    %v93 = vld [vmem:[#allocation6 + $0x18] sm:$0xff]
    %v94 = vld [vmem:[#allocation8] sm:$0xff]
    %v95 = vld [vmem:[#allocation8 + $0x8] sm:$0xff]
    %v96 = vld [vmem:[#allocation8 + $0x10] sm:$0xff]
    %v97 = vld [vmem:[#allocation8 + $0x18] sm:$0xff]
    %v98 = vld [vmem:[%s3] sm:$0x1]
    %v100 = vlaneseq
    %v101 = vshrl.u32 %v100, 7
    %v102 = vsub.s32 0, %v101
    %v103 = vrot.slane %v98, %v102
    %vm105 = vcmask 261120
    %v107 = vsel %vm105, %v88, 0
    %v110 = vsel %vm105, %v89, 0
    %112 = vmatprep.subr.mxu0 0.0
    %113 = vmatpush1.msra.mxu0 %v90
    %114 = vmatprep.subr.mxu0 0.0
    %115 = vmatpush1.msra.mxu0 %v91
    %116 = vmatprep.subr.mxu0 0.0
    %117 = vmatpush1.msra.mxu0 %v92
    %118 = vmatprep.subr.mxu0 0.0
    %119 = vmatpush1.msra.mxu0 %v93
    %120 = vmatprep.subr.mxu0 0.0
    %121 = vmatpush1.msra.mxu0 0.0
    %122 = vmatprep.subr.mxu0 0.0
    %123 = vmatpush1.msra.mxu0 0.0
    %124 = vmatprep.subr.mxu0 0.0
    %125 = vmatpush1.msra.mxu0 0.0
    %126 = vmatprep.subr.mxu0 0.0
    %127 = vmatpush1.msra.mxu0 0.0
    %128 = vmatprep.subr.mxu0 0.0
    %129 = vmatpush1.msra.mxu0 0.0
    %130 = vmatprep.subr.mxu0 0.0
    %131 = vmatpush1.msra.mxu0 0.0
    %132 = vmatprep.subr.mxu0 0.0
    %133 = vmatpush1.msra.mxu0 0.0
    %134 = vmatprep.subr.mxu0 0.0
    %135 = vmatpush1.msra.mxu0 0.0
    %136 = vmatprep.subr.mxu0 0.0
    %137 = vmatpush1.msra.mxu0 0.0
    %138 = vmatprep.subr.mxu0 0.0
    %139 = vmatpush1.msra.mxu0 0.0
    %140 = vmatprep.subr.mxu0 0.0
    %141 = vmatpush1.msra.mxu0 0.0
    %142 = vmatprep.subr.mxu0 0.0
    %143 = vmatpush1.msra.mxu0 0.0
    %144 = vmatprep.subr.mxu0 0.0
    %145 = vmatpush1.msra.mxu0 0.0
    %146 = vmatprep.subr.mxu0 0.0
    %147 = vmatpush1.msra.mxu0 0.0
    %148 = vmatprep.subr.mxu0 0.0
    %149 = vmatpush1.msra.mxu0 0.0
    %150 = vmatprep.subr.mxu0 0.0
    %151 = vmatpush1.msra.mxu0 0.0
    %152 = vmatprep.subr.mxu0 0.0
    %153 = vmatpush1.msra.mxu0 0.0
    %154 = vmatprep.subr.mxu0 0.0
    %155 = vmatpush1.msra.mxu0 0.0
    %156 = vmatprep.subr.mxu0 0.0
    %157 = vmatpush1.msra.mxu0 0.0
    %158 = vmatprep.subr.mxu0 0.0
    %159 = vmatpush1.msra.mxu0 0.0
    %160 = vmatprep.subr.mxu0 0.0
    %161 = vmatpush1.msra.mxu0 0.0
    %162 = vmatprep.subr.mxu0 0.0
    %163 = vmatpush1.msra.mxu0 0.0
    %164 = vmatprep.subr.mxu0 0.0
    %165 = vmatpush1.msra.mxu0 0.0
    %166 = vmatprep.subr.mxu0 0.0
    %167 = vmatpush1.msra.mxu0 0.0
    %168 = vmatprep.subr.mxu0 0.0
    %169 = vmatpush1.msra.mxu0 0.0
    %170 = vmatprep.subr.mxu0 0.0
    %171 = vmatpush1.msra.mxu0 0.0
    %172 = vmatprep.subr.mxu0 0.0
    %173 = vmatpush1.msra.mxu0 0.0
    %174 = vmatprep.subr.mxu0 0.0
    %175 = vmatpush1.msra.mxu0 0.0
    %176 = vmatprep.mubr.f32.mxu0 0.0
    %177 = vmatmul.mubr.f32.gmra.mrb[0].mxu0 %v107
    %v178 = vpop.f32.mrb[0].mxu0
    %v179 = vadd.f32 %v103, %v178
    %v180 = vpop.f32.mrb[0].mxu0
    %181 = vmatprep.mubr.f32.mxu0 0.0
    %182 = vmatmul.mubr.f32.gmra.mrb[0].mxu0 %v110
    %v183 = vpop.f32.mrb[0].mxu0
    %v184 = vadd.f32 %v103, %v183
    %v185 = vpop.f32.mrb[0].mxu0
    %186 = vdwg.mxu0
    %v187 = vld [vmem:[%s4] sm:$0x1]
    %v189 = vlaneseq
    %v190 = vshrl.u32 %v189, 7
    %v191 = vsub.s32 0, %v190
    %v192 = vrot.slane %v187, %v191
    %194 = vmatprep.subr.mxu0 0.0
    %195 = vmatpush1.msra.mxu0 %v94
    %196 = vmatprep.subr.mxu0 0.0
    %197 = vmatpush1.msra.mxu0 %v95
    %198 = vmatprep.subr.mxu0 0.0
    %199 = vmatpush1.msra.mxu0 %v96
    %200 = vmatprep.subr.mxu0 0.0
    %201 = vmatpush1.msra.mxu0 %v97
    %202 = vmatprep.subr.mxu0 0.0
    %203 = vmatpush1.msra.mxu0 0.0
    %204 = vmatprep.subr.mxu0 0.0
    %205 = vmatpush1.msra.mxu0 0.0
    %206 = vmatprep.subr.mxu0 0.0
    %207 = vmatpush1.msra.mxu0 0.0
    %208 = vmatprep.subr.mxu0 0.0
    %209 = vmatpush1.msra.mxu0 0.0
    %210 = vmatprep.subr.mxu0 0.0
    %211 = vmatpush1.msra.mxu0 0.0
    %212 = vmatprep.subr.mxu0 0.0
    %213 = vmatpush1.msra.mxu0 0.0
    %214 = vmatprep.subr.mxu0 0.0
    %215 = vmatpush1.msra.mxu0 0.0
    %216 = vmatprep.subr.mxu0 0.0
    %217 = vmatpush1.msra.mxu0 0.0
    %218 = vmatprep.subr.mxu0 0.0
    %219 = vmatpush1.msra.mxu0 0.0
    %220 = vmatprep.subr.mxu0 0.0
    %221 = vmatpush1.msra.mxu0 0.0
    %222 = vmatprep.subr.mxu0 0.0
    %223 = vmatpush1.msra.mxu0 0.0
    %224 = vmatprep.subr.mxu0 0.0
    %225 = vmatpush1.msra.mxu0 0.0
    %226 = vmatprep.subr.mxu0 0.0
    %227 = vmatpush1.msra.mxu0 0.0
    %228 = vmatprep.subr.mxu0 0.0
    %229 = vmatpush1.msra.mxu0 0.0
    %230 = vmatprep.subr.mxu0 0.0
    %231 = vmatpush1.msra.mxu0 0.0
    %232 = vmatprep.subr.mxu0 0.0
    %233 = vmatpush1.msra.mxu0 0.0
    %234 = vmatprep.subr.mxu0 0.0
    %235 = vmatpush1.msra.mxu0 0.0
    %236 = vmatprep.subr.mxu0 0.0
    %237 = vmatpush1.msra.mxu0 0.0
    %238 = vmatprep.subr.mxu0 0.0
    %239 = vmatpush1.msra.mxu0 0.0
    %240 = vmatprep.subr.mxu0 0.0
    %241 = vmatpush1.msra.mxu0 0.0
    %242 = vmatprep.subr.mxu0 0.0
    %243 = vmatpush1.msra.mxu0 0.0
    %244 = vmatprep.subr.mxu0 0.0
    %245 = vmatpush1.msra.mxu0 0.0
    %246 = vmatprep.subr.mxu0 0.0
    %247 = vmatpush1.msra.mxu0 0.0
    %248 = vmatprep.subr.mxu0 0.0
    %249 = vmatpush1.msra.mxu0 0.0
    %250 = vmatprep.subr.mxu0 0.0
    %251 = vmatpush1.msra.mxu0 0.0
    %252 = vmatprep.subr.mxu0 0.0
    %253 = vmatpush1.msra.mxu0 0.0
    %254 = vmatprep.subr.mxu0 0.0
    %255 = vmatpush1.msra.mxu0 0.0
    %256 = vmatprep.subr.mxu0 0.0
    %257 = vmatpush1.msra.mxu0 0.0
    %258 = vmatprep.mubr.f32.mxu0 0.0
    %259 = vmatmul.mubr.f32.gmra.mrb[0].mxu0 %v107
    %v260 = vpop.f32.mrb[0].mxu0
    %v261 = vadd.f32 %v192, %v260
    %v262 = vpop.f32.mrb[0].mxu0
    %263 = vmatprep.mubr.f32.mxu0 0.0
    %264 = vmatmul.mubr.f32.gmra.mrb[0].mxu0 %v110
    %v265 = vpop.f32.mrb[0].mxu0
    %v266 = vadd.f32 %v192, %v265
    %v267 = vpop.f32.mrb[0].mxu0
    %268 = vdwg.mxu0
    %v269 = vmul.f32 %v261, 0.5
    %v270 = vmul.f32 %v266, 0.5
    %v271 = vmul.f32 %v261, 0.70710677
    %v272 = vmul.f32 %v266, 0.70710677
    %v273 = verf.f32.pop %v271
    %v274 = verf.f32.pop %v272
    %v275 = vadd.f32 %v273, 1.0
    %v276 = vadd.f32 %v274, 1.0
    %v277 = vmul.f32 %v269, %v275
    %v278 = vmul.f32 %v270, %v276
    %v279 = vmul.f32 %v179, %v277
    %v280 = vmul.f32 %v184, %v278
    %v281 = vld [vmem:[#allocation2] sm:$0xff]
    %v282 = vld [vmem:[#allocation2 + $0x8] sm:$0xff]
    %v283 = vld [vmem:[#allocation9] sm:$0xff]
    %v284 = vld [vmem:[#allocation9 + $0x8] sm:$0xff]
    %v285 = vld [vmem:[#allocation9 + $0x10] sm:$0xff]
    %v286 = vld [vmem:[#allocation9 + $0x18] sm:$0xff]
    %v287 = vld [vmem:[#allocation9 + $0x20] sm:$0xff]
    %v288 = vld [vmem:[#allocation9 + $0x28] sm:$0xff]
    %v289 = vld [vmem:[#allocation9 + $0x30] sm:$0xff]
    %v290 = vld [vmem:[#allocation9 + $0x38] sm:$0xff]
    %v291 = vld [vmem:[#allocation9 + $0x40] sm:$0xff]
    %v292 = vld [vmem:[#allocation9 + $0x48] sm:$0xff]
    %v293 = vld [vmem:[#allocation9 + $0x50] sm:$0xff]
    %v294 = vld [vmem:[#allocation9 + $0x58] sm:$0xff]
    %v295 = vld [vmem:[#allocation9 + $0x60] sm:$0xff]
    %v296 = vld [vmem:[#allocation9 + $0x68] sm:$0xff]
    %v297 = vld [vmem:[#allocation9 + $0x70] sm:$0xff]
    %v298 = vld [vmem:[#allocation9 + $0x78] sm:$0xff]
    %299 = vmatprep.subr.mxu0 0.0
    %300 = vmatpush1.msra.mxu0 %v283
    %301 = vmatprep.subr.mxu0 0.0
    %302 = vmatpush1.msra.mxu0 %v284
    %303 = vmatprep.subr.mxu0 0.0
    %304 = vmatpush1.msra.mxu0 %v285
    %305 = vmatprep.subr.mxu0 0.0
    %306 = vmatpush1.msra.mxu0 %v286
    %307 = vmatprep.subr.mxu0 0.0
    %308 = vmatpush1.msra.mxu0 %v287
    %309 = vmatprep.subr.mxu0 0.0
    %310 = vmatpush1.msra.mxu0 %v288
    %311 = vmatprep.subr.mxu0 0.0
    %312 = vmatpush1.msra.mxu0 %v289
    %313 = vmatprep.subr.mxu0 0.0
    %314 = vmatpush1.msra.mxu0 %v290
    %315 = vmatprep.subr.mxu0 0.0
    %316 = vmatpush1.msra.mxu0 %v291
    %317 = vmatprep.subr.mxu0 0.0
    %318 = vmatpush1.msra.mxu0 %v292
    %319 = vmatprep.subr.mxu0 0.0
    %320 = vmatpush1.msra.mxu0 %v293
    %321 = vmatprep.subr.mxu0 0.0
    %322 = vmatpush1.msra.mxu0 %v294
    %323 = vmatprep.subr.mxu0 0.0
    %324 = vmatpush1.msra.mxu0 %v295
    %325 = vmatprep.subr.mxu0 0.0
    %326 = vmatpush1.msra.mxu0 %v296
    %327 = vmatprep.subr.mxu0 0.0
    %328 = vmatpush1.msra.mxu0 %v297
    %329 = vmatprep.subr.mxu0 0.0
    %330 = vmatpush1.msra.mxu0 %v298
    %331 = vmatprep.subr.mxu0 0.0
    %332 = vmatpush1.msra.mxu0 0.0
    %333 = vmatprep.subr.mxu0 0.0
    %334 = vmatpush1.msra.mxu0 0.0
    %335 = vmatprep.subr.mxu0 0.0
    %336 = vmatpush1.msra.mxu0 0.0
    %337 = vmatprep.subr.mxu0 0.0
    %338 = vmatpush1.msra.mxu0 0.0
    %339 = vmatprep.subr.mxu0 0.0
    %340 = vmatpush1.msra.mxu0 0.0
    %341 = vmatprep.subr.mxu0 0.0
    %342 = vmatpush1.msra.mxu0 0.0
    %343 = vmatprep.subr.mxu0 0.0
    %344 = vmatpush1.msra.mxu0 0.0
    %345 = vmatprep.subr.mxu0 0.0
    %346 = vmatpush1.msra.mxu0 0.0
    %347 = vmatprep.subr.mxu0 0.0
    %348 = vmatpush1.msra.mxu0 0.0
    %349 = vmatprep.subr.mxu0 0.0
    %350 = vmatpush1.msra.mxu0 0.0
    %351 = vmatprep.subr.mxu0 0.0
    %352 = vmatpush1.msra.mxu0 0.0
    %353 = vmatprep.subr.mxu0 0.0
    %354 = vmatpush1.msra.mxu0 0.0
    %355 = vmatprep.subr.mxu0 0.0
    %356 = vmatpush1.msra.mxu0 0.0
    %357 = vmatprep.subr.mxu0 0.0
    %358 = vmatpush1.msra.mxu0 0.0
    %359 = vmatprep.subr.mxu0 0.0
    %360 = vmatpush1.msra.mxu0 0.0
    %361 = vmatprep.subr.mxu0 0.0
    %362 = vmatpush1.msra.mxu0 0.0
    %363 = vmatprep.mubr.f32.mxu0 0.0
    %364 = vmatmul.mubr.f32.gmra.mrb[0].mxu0 %v279
    %v365 = vpop.f32.mrb[0].mxu0
    %v366 = vadd.f32 0.0, %v365
    %v367 = vpop.f32.mrb[0].mxu0
    %368 = vmatprep.mubr.f32.mxu0 0.0
    %369 = vmatmul.mubr.f32.gmra.mrb[0].mxu0 %v280
    %v370 = vpop.f32.mrb[0].mxu0
    %v371 = vadd.f32 0.0, %v370
    %v372 = vpop.f32.mrb[0].mxu0
    %373 = vdwg.mxu0
    %v374 = vadd.f32 %v281, %v366
    %v375 = vadd.f32 %v282, %v371
    %376 = vst [vmem:[#allocation2] sm:$0xff] %v374
    %377 = vst [vmem:[#allocation2 + $0x8] sm:$0xff] %v375
    // Predicated region
    $region50: #{tpu_custom_call.1} parent=1 // pred_check
      %p378 = pneg %p82
    $region51: #{tpu_custom_call.1} parent=1 // pred_check_branch
      %380 = sbr.rel (%p378) target = $region53
    $region52: #{tpu_custom_call.1} parent=1 // pred_region
      %v381 = vld [vmem:[#allocation2] sm:$0xff]
      %v382 = vld [vmem:[#allocation2 + $0x8] sm:$0xff]
      %v383 = vld [vmem:[%s6] sm:$0x1]
      %v385 = vlaneseq
      %v386 = vshrl.u32 %v385, 7
      %v387 = vsub.s32 0, %v386
      %v388 = vrot.slane %v383, %v387
      %v390 = vadd.f32 %v381, %v388
      %v391 = vadd.f32 %v382, %v388
      %392 = vst [vmem:[#allocation11] sm:$0xff] %v390
      %393 = vst [vmem:[#allocation11 + $0x8] sm:$0xff] %v391
    $region53: #{tpu_custom_call.1} parent=1 // pred_fallthru
      _
    // Predicated region
    $region54: #{tpu_custom_call.1} parent=1 // pred_check
      _
    $region55: #{tpu_custom_call.1} parent=1 // pred_check_branch
      %395 = sbr.rel (0) target = $region57
    $region56: #{tpu_custom_call.1} parent=1 // pred_region
      %s397 = ssub.s32 256, 256
      %398 = vsyncadd [#allocation5], %s397
      %s399 = sshll.u32 [#allocation11], 4
      %s400 = int_to_ptr.vmem [resolvable:$true] %s399
      %405 = dma.vmem_to_hbm [thread:$0]  %s400, 256, %s7, [#allocation5], 128, 128, 8
    $region57: #{tpu_custom_call.1} parent=1 // pred_fallthru
      _
    // Predicated region
    $region58: #{tpu_custom_call.1} parent=1 // pred_check
      _
    $region59: #{tpu_custom_call.1} parent=1 // pred_check_branch
      %407 = sbr.rel (0) target = $region61
    $region60: #{tpu_custom_call.1} parent=1 // pred_region
      %408 = dma.done [#allocation5], 256
    $region61: #{tpu_custom_call.1} parent=1 // pred_fallthru
      _
    %409 = vsyncpa [#allocation4], 1
    %410 = vsyncpa [#allocation7], 1
    %411 = vsyncpa [#allocation10], 1
    %412 = vsyncpa [#allocation5], 1

</llo_original>
